<compile_context>
chip_gen: v7x
topology: tpu7x:2x2x1
jax: 0.10.0
libtpu: 0.0.40
codegen_flags: <defaults>
</compile_context>

<pallas_src>
import jax
import jax.numpy as jnp
from jax.experimental import pallas as pl
from jax.experimental.pallas import tpu as pltpu

BN_EPS = 1e-5


def _hidden_to_lognormal_kernel(
    h_ref,       # [B, H]          hidden states (resident across the T grid)
    w_ref,       # [H, 2*tile_t]   fused weight tile: [w_mu_tile | w_lv_tile]
    gb_ref,      # [2, 2*tile_t]   row 0 = gamma (mu|lv), row 1 = beta (mu|lv)
    loc_ref,     # [B, tile_t]     output: LogNormal loc   (mu)
    scale_ref,   # [B, tile_t]     output: LogNormal scale (exp(0.5*lv))
):
    # One fused MXU matmul per topic tile, f32 accumulation.
    y = jnp.dot(h_ref[...], w_ref[...], preferred_element_type=jnp.float32)

    # BatchNorm1d, training mode: batch statistics, biased variance, eps=1e-5.
    # Two-pass statistics: cheap (VPU slack) and numerically safe.
    mean = jnp.mean(y, axis=0, keepdims=True)
    centered = y - mean
    var = jnp.mean(centered * centered, axis=0, keepdims=True)

    gamma = gb_ref[0:1, :]                       # [1, 2*tile_t]
    beta = gb_ref[1:2, :]                        # [1, 2*tile_t]
    y_bn = centered * (jax.lax.rsqrt(var + BN_EPS) * gamma) + beta

    tT = loc_ref.shape[1]                        # static, multiple of 128
    loc_ref[...] = y_bn[:, :tT].astype(loc_ref.dtype)
    scale_ref[...] = jnp.exp(0.5 * y_bn[:, tT:]).astype(scale_ref.dtype)


def pack_params(params, *, tile_t=128, compute_dtype=jnp.bfloat16):
    """Pack weights + BN affine params into the fused, tiled kernel layout.

    Call ONCE at parameter-load time (not per forward call): the kernel is
    weight-bandwidth-bound and the repack would otherwise double HBM traffic.

    Returns dict with:
      w_fused: [nT, H, 2*tile_t]  per tile = [mu columns | lv columns], compute_dtype
      gb:      [nT, 2, 2*tile_t]  row 0 = gamma, row 1 = beta, f32
      num_topics, tile_t: static ints
    """
    assert tile_t % 128 == 0, "tile_t must be a multiple of 128 (lane-dense output)"
    H, T = params["w_mu"].shape
    nT = pl.cdiv(T, tile_t)
    T_pad = nT * tile_t

    def tile_weight(w):                                      # w: [H, T]
        wp = jnp.pad(w, ((0, 0), (0, T_pad - T)))            # zero-pad extra topics
        return wp.reshape(H, nT, tile_t).transpose(1, 0, 2)  # [nT, H, tile_t]

    w_fused = jnp.concatenate(
        [tile_weight(params["w_mu"]), tile_weight(params["w_lv"])], axis=-1
    ).astype(compute_dtype)                                   # [nT, H, 2*tile_t]

    def tile_feat(x, pad_val):                                # x: [1, T]
        xp = jnp.pad(x.reshape(1, T), ((0, 0), (0, T_pad - T)),
                     constant_values=pad_val)
        return xp.reshape(nT, tile_t)

    g_row = jnp.concatenate(
        [tile_feat(params["gamma_mu"], 1.0), tile_feat(params["gamma_lv"], 1.0)], axis=-1)
    b_row = jnp.concatenate(
        [tile_feat(params["beta_mu"], 0.0), tile_feat(params["beta_lv"], 0.0)], axis=-1)
    gb = jnp.stack([g_row, b_row], axis=1).astype(jnp.float32)  # [nT, 2, 2*tile_t]

    # NOTE: b_mu / b_lv are intentionally NOT packed: a constant per-feature
    # shift before training-mode BatchNorm is exactly cancelled by the mean
    # subtraction.
    return {"w_fused": w_fused, "gb": gb,
            "num_topics": int(T), "tile_t": int(tile_t)}


def hidden_to_lognormal(hidden, packed, *, out_dtype=jnp.float32,
                        hidden_buffer_count=None, core_parallel=False):
    """Returns (loc, scale) of the LogNormal, each [batch, num_topics].

    out_dtype:            dtype of loc/scale writeback (bf16 halves output HBM bytes).
    hidden_buffer_count:  pass 1 on v7x to drop the dead second buffer of the
                          resident hidden block (None keeps the default pipelining).
    core_parallel:        True on v7x with nT >= 2 to shard topic tiles across
                          both TensorCores (CORE_PARALLEL semantics).
    """
    w_fused, gb = packed["w_fused"], packed["gb"]
    T, tile_t = packed["num_topics"], packed["tile_t"]
    nT, H, _ = w_fused.shape
    B = hidden.shape[0]
    T_pad = nT * tile_t

    dt = w_fused.dtype
    h_in = hidden.astype(dt)
    w_item = jnp.dtype(dt).itemsize
    out_item = jnp.dtype(out_dtype).itemsize

    # VMEM budget (per grid step) -> explicit scoped-VMEM limit with headroom.
    hbufs = 2 if hidden_buffer_count is None else hidden_buffer_count
    vmem_est = (hbufs * B * H * w_item                 # resident hidden
                + 2 * H * 2 * tile_t * w_item          # double-buffered weights
                + 2 * 2 * 2 * tile_t * 4               # gb
                + 2 * 2 * B * tile_t * out_item)       # double-buffered outputs
    vmem_limit = int(min(max(2 * vmem_est, 32 * 1024 * 1024), 100 * 1024 * 1024))

    h_spec_kwargs = {}
    if hidden_buffer_count is not None:
        # Hidden block is resident (constant index_map); extra buffers are dead VMEM.
        h_spec_kwargs["pipeline_mode"] = pl.Buffered(hidden_buffer_count)

    dim_sem = (pltpu.CORE_PARALLEL,) if core_parallel else ("parallel",)

    cost = pl.CostEstimate(
        flops=2 * B * H * 2 * T_pad,
        transcendentals=B * T_pad,
        bytes_accessed=int(B * H * w_item
                           + w_fused.size * w_item
                           + gb.size * 4
                           + 2 * B * T_pad * out_item),
    )

    loc_p, scale_p = pl.pallas_call(
        _hidden_to_lognormal_kernel,
        out_shape=(
            jax.ShapeDtypeStruct((B, T_pad), out_dtype),
            jax.ShapeDtypeStruct((B, T_pad), out_dtype),
        ),
        grid_spec=pltpu.PrefetchScalarGridSpec(
            num_scalar_prefetch=0,
            grid=(nT,),
            in_specs=[
                pl.BlockSpec((B, H), lambda j: (0, 0), **h_spec_kwargs),   # resident
                pl.BlockSpec((None, H, 2 * tile_t), lambda j: (j, 0, 0)),  # weights
                pl.BlockSpec((None, 2, 2 * tile_t), lambda j: (j, 0, 0)),  # gamma/beta
            ],
            out_specs=[
                pl.BlockSpec((B, tile_t), lambda j: (0, j)),
                pl.BlockSpec((B, tile_t), lambda j: (0, j)),
            ],
        ),
        compiler_params=pltpu.CompilerParams(
            dimension_semantics=dim_sem,
            vmem_limit_bytes=vmem_limit,
        ),
        cost_estimate=cost,
    )(h_in, w_fused, gb)

    return loc_p[:, :T], scale_p[:, :T]


def init_params(key, hidden_size, num_topics):
    """Deterministic synthetic parameters matching the torch module's shapes."""
    k1, k2, k3, k4 = jax.random.split(key, 4)
    bound = 1.0 / jnp.sqrt(hidden_size)  # mimic torch Linear default init range
    return {
        # torch stores Linear weight as [out, in]; we keep [in, out] for the kernel.
        "w_mu": jax.random.uniform(k1, (hidden_size, num_topics), jnp.float32, -bound, bound),
        "b_mu": jax.random.uniform(k2, (1, num_topics), jnp.float32, -bound, bound),
        "w_lv": jax.random.uniform(k3, (hidden_size, num_topics), jnp.float32, -bound, bound),
        "b_lv": jax.random.uniform(k4, (1, num_topics), jnp.float32, -bound, bound),
        # BatchNorm1d affine params: gamma=1, beta=0 at init.
        "gamma_mu": jnp.ones((1, num_topics), jnp.float32),
        "beta_mu": jnp.zeros((1, num_topics), jnp.float32),
        "gamma_lv": jnp.ones((1, num_topics), jnp.float32),
        "beta_lv": jnp.zeros((1, num_topics), jnp.float32),
    }


def _reference(hidden, p):
    """Plain-JAX reference of the torch forward pass (WITH the Linear biases)."""
    def bn(x, g, b):
        m = jnp.mean(x, axis=0, keepdims=True)
        v = jnp.mean((x - m) ** 2, axis=0, keepdims=True)
        return (x - m) / jnp.sqrt(v + BN_EPS) * g + b

    mu = bn(hidden @ p["w_mu"] + p["b_mu"], p["gamma_mu"], p["beta_mu"])
    lv = bn(hidden @ p["w_lv"] + p["b_lv"], p["gamma_lv"], p["beta_lv"])
    return mu, jnp.exp(0.5 * lv)


if __name__ == "__main__":
    batch, hidden_size, num_topics = 8, 32, 16

    key = jax.random.PRNGKey(0)
    k_h, k_p = jax.random.split(key)
    hidden = jax.random.normal(k_h, (batch, hidden_size), jnp.float32)
    params = init_params(k_p, hidden_size, num_topics)

    ref_loc, ref_scale = _reference(hidden, params)

    # f32-operand path — tight check (bias-before-BN cancellation is exact, so
    # the bias-free kernel matches the bias-including reference).
    packed_f32 = pack_params(params, compute_dtype=jnp.float32)
    loc, scale = hidden_to_lognormal(hidden, packed_f32)
    jax.block_until_ready((loc, scale))
    assert loc.shape == (batch, num_topics) and scale.shape == (batch, num_topics)
    assert jnp.allclose(loc, ref_loc, atol=2e-4, rtol=2e-4)
    assert jnp.allclose(scale, ref_scale, atol=2e-4, rtol=2e-4)

    # Default packing (bf16 MXU operands — the HBM-halving fast path on
    # v5e/v6e/v7x) with bf16 outputs — loose check.
    packed_bf16 = pack_params(params)
    loc_bf, scale_bf = hidden_to_lognormal(hidden, packed_bf16, out_dtype=jnp.bfloat16)
    jax.block_until_ready((loc_bf, scale_bf))
    assert jnp.allclose(loc_bf.astype(jnp.float32), ref_loc, atol=1.5e-1, rtol=1e-1)
    assert jnp.allclose(scale_bf.astype(jnp.float32), ref_scale, atol=1.5e-1, rtol=1e-1)

    # TODO(synk): the torch module returns a LogNormal Distribution object;
    # here we return its parameters (loc, scale) since distributions have no
    # Pallas equivalent.
    print("KERNEL_OK")
</pallas_src>

<mosaic_0001>
module attributes {stable_mosaic.version = 11 : i64} {
  func.func @_hidden_to_lognormal_kernel(%arg0: i32, %arg1: memref<8x32xf32, #tpu.memory_space<vmem>>, %arg2: memref<1x32x256xf32, #tpu.memory_space<vmem>>, %arg3: memref<1x2x256xf32, #tpu.memory_space<vmem>>, %arg4: memref<8x128xf32, #tpu.memory_space<vmem>>, %arg5: memref<8x128xf32, #tpu.memory_space<vmem>>) attributes {dimension_semantics = [#tpu.dimension_semantics<parallel>], iteration_bounds = array<i64: 1>, scalar_prefetch = 0 : i64, scratch_operands = 0 : i64, tpu.core_type = #tpu.core_type<tc>, window_params = [{pipeline_mode = #tpu.pipeline_mode<synchronous>, transform_indices = @transform_0, window_bounds = array<i64: 8, 32>}, {transform_indices = @transform_1, window_bounds = array<i64: 1, 32, 256>}, {transform_indices = @transform_2, window_bounds = array<i64: 1, 2, 256>}, {transform_indices = @transform_3, window_bounds = array<i64: 8, 128>}, {transform_indices = @transform_4, window_bounds = array<i64: 8, 128>}]} {
    %c0 = arith.constant 0 : index
    %c0_0 = arith.constant 0 : index
    %0 = vector.load %arg1[%c0, %c0_0] : memref<8x32xf32, #tpu.memory_space<vmem>>, vector<8x32xf32>
    %c0_1 = arith.constant 0 : index
    %c0_2 = arith.constant 0 : index
    %c0_3 = arith.constant 0 : index
    %1 = vector.load %arg2[%c0_1, %c0_2, %c0_3] : memref<1x32x256xf32, #tpu.memory_space<vmem>>, vector<1x32x256xf32>
    %2 = vector.shape_cast %1 : vector<1x32x256xf32> to vector<32x256xf32>
    %cst = arith.constant dense<0.000000e+00> : vector<8x256xf32>
    %3 = tpu.matmul %0, %2, %cst {dimension_numbers = #tpu.dot_dimension_numbers<[1], [0], [0], [1], [0, 0, 1, 1], [], []>} : vector<8x32xf32>, vector<32x256xf32>, vector<8x256xf32> -> vector<8x256xf32>
    %cst_4 = arith.constant dense<0.000000e+00> : vector<256xf32>
    %4 = vector.multi_reduction <add>, %3, %cst_4 [0] : vector<8x256xf32> to vector<256xf32>
    %5 = vector.shape_cast %4 : vector<256xf32> to vector<1x256xf32>
    %cst_5 = arith.constant 8.000000e+00 : f32
    %6 = vector.broadcast %cst_5 : f32 to vector<1x256xf32>
    %7 = arith.divf %5, %6 : vector<1x256xf32>
    %8 = vector.broadcast %7 : vector<1x256xf32> to vector<8x256xf32>
    %9 = arith.subf %3, %8 : vector<8x256xf32>
    %10 = arith.mulf %9, %9 : vector<8x256xf32>
    %cst_6 = arith.constant dense<0.000000e+00> : vector<256xf32>
    %11 = vector.multi_reduction <add>, %10, %cst_6 [0] : vector<8x256xf32> to vector<256xf32>
    %12 = vector.shape_cast %11 : vector<256xf32> to vector<1x256xf32>
    %cst_7 = arith.constant 8.000000e+00 : f32
    %13 = vector.broadcast %cst_7 : f32 to vector<1x256xf32>
    %14 = arith.divf %12, %13 : vector<1x256xf32>
    %c0_8 = arith.constant 0 : index
    %c0_9 = arith.constant 0 : index
    %c0_10 = arith.constant 0 : index
    %15 = vector.load %arg3[%c0_8, %c0_9, %c0_10] : memref<1x2x256xf32, #tpu.memory_space<vmem>>, vector<1x1x256xf32>
    %16 = vector.shape_cast %15 : vector<1x1x256xf32> to vector<1x256xf32>
    %c0_11 = arith.constant 0 : index
    %c1 = arith.constant 1 : index
    %c0_12 = arith.constant 0 : index
    %17 = vector.load %arg3[%c0_11, %c1, %c0_12] : memref<1x2x256xf32, #tpu.memory_space<vmem>>, vector<1x1x256xf32>
    %18 = vector.shape_cast %17 : vector<1x1x256xf32> to vector<1x256xf32>
    %cst_13 = arith.constant 9.99999974E-6 : f32
    %19 = vector.broadcast %cst_13 : f32 to vector<1x256xf32>
    %20 = arith.addf %14, %19 : vector<1x256xf32>
    %21 = math.rsqrt %20 : vector<1x256xf32>
    %22 = arith.mulf %21, %16 : vector<1x256xf32>
    %23 = vector.broadcast %22 : vector<1x256xf32> to vector<8x256xf32>
    %24 = arith.mulf %9, %23 : vector<8x256xf32>
    %25 = vector.broadcast %18 : vector<1x256xf32> to vector<8x256xf32>
    %26 = arith.addf %24, %25 : vector<8x256xf32>
    %27 = vector.extract_strided_slice %26 {offsets = [0, 0], sizes = [8, 128], strides = [1, 1]} : vector<8x256xf32> to vector<8x128xf32>
    %c0_14 = arith.constant 0 : index
    %c0_15 = arith.constant 0 : index
    %28 = vector.load %arg4[%c0_14, %c0_15] : memref<8x128xf32, #tpu.memory_space<vmem>>, vector<8x128xf32>
    tpu.vector_store %arg4[%c0_14, %c0_15], %27 {strides = array<i32>} : memref<8x128xf32, #tpu.memory_space<vmem>>, vector<8x128xf32>,
    %29 = vector.extract_strided_slice %26 {offsets = [0, 128], sizes = [8, 128], strides = [1, 1]} : vector<8x256xf32> to vector<8x128xf32>
    %cst_16 = arith.constant 5.000000e-01 : f32
    %30 = vector.broadcast %cst_16 : f32 to vector<8x128xf32>
    %31 = arith.mulf %30, %29 : vector<8x128xf32>
    %32 = math.exp %31 : vector<8x128xf32>
    %c0_17 = arith.constant 0 : index
    %c0_18 = arith.constant 0 : index
    %33 = vector.load %arg5[%c0_17, %c0_18] : memref<8x128xf32, #tpu.memory_space<vmem>>, vector<8x128xf32>
    tpu.vector_store %arg5[%c0_17, %c0_18], %32 {strides = array<i32>} : memref<8x128xf32, #tpu.memory_space<vmem>>, vector<8x128xf32>,
    return
  }
  func.func @transform_0(%arg0: i32) -> (i32, i32) {
    %c0_i32 = arith.constant 0 : i32
    %c0_i32_0 = arith.constant 0 : i32
    %c0_i32_1 = arith.constant 0 : i32
    return %c0_i32, %c0_i32_0 : i32, i32
  }
  func.func @transform_1(%arg0: i32) -> (i32, i32, i32) {
    %c0_i32 = arith.constant 0 : i32
    %c0_i32_0 = arith.constant 0 : i32
    %c0_i32_1 = arith.constant 0 : i32
    return %arg0, %c0_i32, %c0_i32_0 : i32, i32, i32
  }
  func.func @transform_2(%arg0: i32) -> (i32, i32, i32) {
    %c0_i32 = arith.constant 0 : i32
    %c0_i32_0 = arith.constant 0 : i32
    %c0_i32_1 = arith.constant 0 : i32
    return %arg0, %c0_i32, %c0_i32_0 : i32, i32, i32
  }
  func.func @transform_3(%arg0: i32) -> (i32, i32) {
    %c0_i32 = arith.constant 0 : i32
    %c0_i32_0 = arith.constant 0 : i32
    return %c0_i32, %arg0 : i32, i32
  }
  func.func @transform_4(%arg0: i32) -> (i32, i32) {
    %c0_i32 = arith.constant 0 : i32
    %c0_i32_0 = arith.constant 0 : i32
    return %c0_i32, %arg0 : i32, i32
  }
}

</mosaic_0001>

<llo_original>
// kernel: tpu_custom_call.1
$region0: #{tpu_custom_call.1}
  #allocation0 [shape = 'u32[]', space=smem, size = 0x4, offset = 0x4, fixed_abs, tag = 'smem constant byte address 0x4 - core index']
  #allocation1 [shape = 'u32[144,128]{1,0:T(1,128)}', space=vmem, size = 0x12000, scoped, tag = 'internal scratch']
  %s0 = inlined_call_operand.hbm [shape: f32[8,32], index: 0, kind: input, shape index: {}]
  %s1 = inlined_call_operand.hbm [shape: f32[1,32,256], index: 1, kind: input, shape index: {}]
  %s2 = inlined_call_operand.vmem [shape: f32[1,2,256], index: 2, kind: input, shape index: {}]
  %s3 = inlined_call_operand.hbm [shape: f32[8,128], index: 3, kind: output, shape index: {0}]
  %s4 = inlined_call_operand.hbm [shape: f32[8,128], index: 4, kind: output, shape index: {1}]
  %5 = xla_tuple %s3, %s4
  %s6 = sld [smem:[#allocation0]]
  $region38: #{tpu_custom_call.1} parent=0
    _
  %s8 = ssub.s32 1, %s6
  %s9 = scalar_select 0, %s8, %s6
  $region1: #{tpu_custom_call.1} parent=0
    #allocation2 [shape = 'u8[4096]{0}', space=vmem, size = 0x1000, scoped, tag = 'input window, operand 0, single buffered']
    #allocation3 [shape = 's32[1]{0}', space=sflag, size = 0x4, scoped, tag = 'scoped memory for tpu_custom_call.1']
    #allocation4 [shape = 's32[1]{0}', space=sflag, size = 0x4, scoped, tag = 'scoped memory for tpu_custom_call.1']
    #allocation5 [shape = 'u8[32768]{0}', space=vmem, size = 0x8000, scoped, tag = 'input window, operand 1, single buffered']
    #allocation6 [shape = 's32[1]{0}', space=sflag, size = 0x4, scoped, tag = 'scoped memory for tpu_custom_call.1']
    #allocation7 [shape = 'u8[4096]{0}', space=vmem, size = 0x1000, scoped, tag = 'output window, operand 0, single buffered']
    #allocation8 [shape = 'u8[4096]{0}', space=vmem, size = 0x1000, scoped, tag = 'output window, operand 1, single buffered']
    #allocation9 [shape = 's32[1]{0}', space=sflag, size = 0x4, scoped, tag = 'scoped memory for tpu_custom_call.1']
    %10 = vsyncpa [#allocation3], 0
    %11 = vsyncpa [#allocation6], 0
    %12 = vsyncpa [#allocation4], 0
    %13 = vsyncpa [#allocation9], 0
    // Predicated region
    $region2: #{tpu_custom_call.1} parent=1 // pred_check
      _
    $region3: #{tpu_custom_call.1} parent=1 // pred_check_branch
      %15 = sbr.rel (0) target = $region5
    $region4: #{tpu_custom_call.1} parent=1 // pred_region
      %s17 = ssub.s32 128, 128
      %18 = vsyncadd [#allocation3], %s17
      %s20 = sshll.u32 [#allocation2], 4
      %s21 = int_to_ptr.vmem [resolvable:$true] %s20
      %23 = dma.hbm_to_vmem [thread:$0]  %s0, 128, %s21, [#allocation3]
    $region5: #{tpu_custom_call.1} parent=1 // pred_fallthru
      _
    // Predicated region
    $region6: #{tpu_custom_call.1} parent=1 // pred_check
      _
    $region7: #{tpu_custom_call.1} parent=1 // pred_check_branch
      %25 = sbr.rel (0) target = $region9
    $region8: #{tpu_custom_call.1} parent=1 // pred_region
      %s27 = ssub.s32 1024, 1024
      %28 = vsyncadd [#allocation6], %s27
      %s29 = sshll.u32 [#allocation5], 4
      %s30 = int_to_ptr.vmem [resolvable:$true] %s29
      %35 = dma.hbm_to_vmem [thread:$0]  %s1, 1024, %s30, [#allocation6], 256, 256, 16
    $region9: #{tpu_custom_call.1} parent=1 // pred_fallthru
      _
    // Predicated region
    $region10: #{tpu_custom_call.1} parent=1 // pred_check
      _
    $region11: #{tpu_custom_call.1} parent=1 // pred_check_branch
      %37 = sbr.rel (0) target = $region13
    $region12: #{tpu_custom_call.1} parent=1 // pred_region
      _
    $region13: #{tpu_custom_call.1} parent=1 // pred_fallthru
      _
    // Predicated region
    $region14: #{tpu_custom_call.1} parent=1 // pred_check
      _
    $region15: #{tpu_custom_call.1} parent=1 // pred_check_branch
      %39 = sbr.rel (0) target = $region17
    $region16: #{tpu_custom_call.1} parent=1 // pred_region
      %40 = dma.done [#allocation3], 128
    $region17: #{tpu_custom_call.1} parent=1 // pred_fallthru
      _
    // Predicated region
    $region18: #{tpu_custom_call.1} parent=1 // pred_check
      _
    $region19: #{tpu_custom_call.1} parent=1 // pred_check_branch
      %42 = sbr.rel (0) target = $region21
    $region20: #{tpu_custom_call.1} parent=1 // pred_region
      %43 = dma.done [#allocation6], 1024
    $region21: #{tpu_custom_call.1} parent=1 // pred_fallthru
      _
    %v44 = vld [vmem:[#allocation2] sm:$0xff]
    %v45 = vld [vmem:[#allocation5] sm:$0xff]
    %v46 = vld [vmem:[#allocation5 + $0x8] sm:$0xff]
    %v47 = vld [vmem:[#allocation5 + $0x10] sm:$0xff]
    %v48 = vld [vmem:[#allocation5 + $0x18] sm:$0xff]
    %v49 = vld [vmem:[#allocation5 + $0x20] sm:$0xff]
    %v50 = vld [vmem:[#allocation5 + $0x28] sm:$0xff]
    %v51 = vld [vmem:[#allocation5 + $0x30] sm:$0xff]
    %v52 = vld [vmem:[#allocation5 + $0x38] sm:$0xff]
    %vm53 = vcmask 261120
    %v55 = vsel %vm53, %v44, 0
    %57 = vmatprep.subr.mxu0 %v46
    %58 = vmatpush1.msra.mxu0 %v45
    %59 = vmatprep.subr.mxu0 %v48
    %60 = vmatpush1.msra.mxu0 %v47
    %61 = vmatprep.subr.mxu0 %v50
    %62 = vmatpush1.msra.mxu0 %v49
    %63 = vmatprep.subr.mxu0 %v52
    %64 = vmatpush1.msra.mxu0 %v51
    %65 = vmatprep.subr.mxu0 0.0
    %66 = vmatpush1.msra.mxu0 0.0
    %67 = vmatprep.subr.mxu0 0.0
    %68 = vmatpush1.msra.mxu0 0.0
    %69 = vmatprep.subr.mxu0 0.0
    %70 = vmatpush1.msra.mxu0 0.0
    %71 = vmatprep.subr.mxu0 0.0
    %72 = vmatpush1.msra.mxu0 0.0
    %73 = vmatprep.subr.mxu0 0.0
    %74 = vmatpush1.msra.mxu0 0.0
    %75 = vmatprep.subr.mxu0 0.0
    %76 = vmatpush1.msra.mxu0 0.0
    %77 = vmatprep.subr.mxu0 0.0
    %78 = vmatpush1.msra.mxu0 0.0
    %79 = vmatprep.subr.mxu0 0.0
    %80 = vmatpush1.msra.mxu0 0.0
    %81 = vmatprep.subr.mxu0 0.0
    %82 = vmatpush1.msra.mxu0 0.0
    %83 = vmatprep.subr.mxu0 0.0
    %84 = vmatpush1.msra.mxu0 0.0
    %85 = vmatprep.subr.mxu0 0.0
    %86 = vmatpush1.msra.mxu0 0.0
    %87 = vmatprep.subr.mxu0 0.0
    %88 = vmatpush1.msra.mxu0 0.0
    %89 = vmatprep.subr.mxu0 0.0
    %90 = vmatpush1.msra.mxu0 0.0
    %91 = vmatprep.subr.mxu0 0.0
    %92 = vmatpush1.msra.mxu0 0.0
    %93 = vmatprep.subr.mxu0 0.0
    %94 = vmatpush1.msra.mxu0 0.0
    %95 = vmatprep.subr.mxu0 0.0
    %96 = vmatpush1.msra.mxu0 0.0
    %97 = vmatprep.subr.mxu0 0.0
    %98 = vmatpush1.msra.mxu0 0.0
    %99 = vmatprep.subr.mxu0 0.0
    %100 = vmatpush1.msra.mxu0 0.0
    %101 = vmatprep.subr.mxu0 0.0
    %102 = vmatpush1.msra.mxu0 0.0
    %103 = vmatprep.subr.mxu0 0.0
    %104 = vmatpush1.msra.mxu0 0.0
    %105 = vmatprep.subr.mxu0 0.0
    %106 = vmatpush1.msra.mxu0 0.0
    %107 = vmatprep.subr.mxu0 0.0
    %108 = vmatpush1.msra.mxu0 0.0
    %109 = vmatprep.subr.mxu0 0.0
    %110 = vmatpush1.msra.mxu0 0.0
    %111 = vmatprep.subr.mxu0 0.0
    %112 = vmatpush1.msra.mxu0 0.0
    %113 = vmatprep.subr.mxu0 0.0
    %114 = vmatpush1.msra.mxu0 0.0
    %115 = vmatprep.subr.mxu0 0.0
    %116 = vmatpush1.msra.mxu0 0.0
    %117 = vmatprep.subr.mxu0 0.0
    %118 = vmatpush1.msra.mxu0 0.0
    %119 = vmatprep.subr.mxu0 0.0
    %120 = vmatpush1.msra.mxu0 0.0
    %121 = vmatprep.mubr.f32.mxu0 0.0
    %122 = vmatmul.mubr.f32.gmra.mrb[0].mxu0 %v55
    %v123 = vpop.f32.mrb[0].mxu0
    %v124 = vadd.f32 0.0, %v123
    %v125 = vpop.f32.mrb[0].mxu0
    %v126 = vadd.f32 0.0, %v125
    %127 = vdwg.mxu0
    %v128 = vrot.slane %v124, 4
    %v129 = vadd.f32 %v124, %v128
    %v130 = vrot.slane %v129, 2
    %v131 = vadd.f32 %v129, %v130
    %v132 = vrot.slane %v131, 1
    %v133 = vadd.f32 %v131, %v132
    %v134 = vrot.slane %v126, 4
    %v135 = vadd.f32 %v126, %v134
    %v136 = vrot.slane %v135, 2
    %v137 = vadd.f32 %v135, %v136
    %v138 = vrot.slane %v137, 1
    %v139 = vadd.f32 %v137, %v138
    %v140 = vrcp.pop 8.0
    %v141 = vmul.f32 %v133, %v140
    %v142 = vmul.f32 %v139, %v140
    %v143 = vsub.f32 %v124, %v141
    %v144 = vsub.f32 %v126, %v142
    %v145 = vmul.f32 %v143, %v143
    %v146 = vmul.f32 %v144, %v144
    %v147 = vrot.slane %v145, 4
    %v148 = vadd.f32 %v145, %v147
    %v149 = vrot.slane %v148, 2
    %v150 = vadd.f32 %v148, %v149
    %v151 = vrot.slane %v150, 1
    %v152 = vadd.f32 %v150, %v151
    %v153 = vrot.slane %v146, 4
    %v154 = vadd.f32 %v146, %v153
    %v155 = vrot.slane %v154, 2
    %v156 = vadd.f32 %v154, %v155
    %v157 = vrot.slane %v156, 1
    %v158 = vadd.f32 %v156, %v157
    %v159 = vmul.f32 %v152, %v140
    %v160 = vmul.f32 %v158, %v140
    %v161 = vld [vmem:[%s2] ss:$2 sm:$0x3]
    %s162 = scalar_lea.vmem %s2, 1
    %v163 = vld [vmem:[%s162] ss:$2 sm:$0x3]
    %v164 = vadd.f32 %v159, 1e-05
    %v165 = vadd.f32 %v160, 1e-05
    %v166 = vrsqrt.pop %v164
    %v167 = vrsqrt.pop %v165
    %v169 = vlaneseq
    %v170 = vshrl.u32 %v169, 7
    %v171 = vsub.s32 0, %v170
    %v172 = vrot.slane %v161, %v171
    %v173 = vlaneseq
    %v174 = vshrl.u32 %v173, 7
    %v175 = vsub.s32 1, %v174
    %v176 = vrot.slane %v161, %v175
    %v179 = vmul.f32 %v166, %v172
    %v180 = vmul.f32 %v167, %v176
    %v181 = vlaneseq
    %v182 = vshrl.u32 %v181, 7
    %v183 = vsub.s32 0, %v182
    %v184 = vrot.slane %v179, %v183
    %v185 = vlaneseq
    %v186 = vshrl.u32 %v185, 7
    %v187 = vsub.s32 0, %v186
    %v188 = vrot.slane %v180, %v187
    %v189 = vmul.f32 %v143, %v184
    %v190 = vmul.f32 %v144, %v188
    %v192 = vlaneseq
    %v193 = vshrl.u32 %v192, 7
    %v194 = vsub.s32 0, %v193
    %v195 = vrot.slane %v163, %v194
    %v196 = vlaneseq
    %v197 = vshrl.u32 %v196, 7
    %v198 = vsub.s32 1, %v197
    %v199 = vrot.slane %v163, %v198
    %v202 = vadd.f32 %v189, %v195
    %v203 = vadd.f32 %v190, %v199
    %204 = vst [vmem:[#allocation7] sm:$0xff] %v202
    %v205 = vmul.f32 %v203, 0.5
    %v206 = vmul.f32 %v205, 1.442695
    %v207 = vpow.pop %v206
    %208 = vst [vmem:[#allocation8] sm:$0xff] %v207
    // Predicated region
    $region22: #{tpu_custom_call.1} parent=1 // pred_check
      _
    $region23: #{tpu_custom_call.1} parent=1 // pred_check_branch
      %210 = sbr.rel (0) target = $region25
    $region24: #{tpu_custom_call.1} parent=1 // pred_region
      %s212 = ssub.s32 128, 128
      %213 = vsyncadd [#allocation4], %s212
      %s215 = sshll.u32 [#allocation7], 4
      %s216 = int_to_ptr.vmem [resolvable:$true] %s215
      %218 = dma.vmem_to_hbm [thread:$0]  %s216, 128, %s3, [#allocation4]
    $region25: #{tpu_custom_call.1} parent=1 // pred_fallthru
      _
    // Predicated region
    $region26: #{tpu_custom_call.1} parent=1 // pred_check
      _
    $region27: #{tpu_custom_call.1} parent=1 // pred_check_branch
      %220 = sbr.rel (0) target = $region29
    $region28: #{tpu_custom_call.1} parent=1 // pred_region
      %s222 = ssub.s32 128, 128
      %223 = vsyncadd [#allocation9], %s222
      %s225 = sshll.u32 [#allocation8], 4
      %s226 = int_to_ptr.vmem [resolvable:$true] %s225
      %228 = dma.vmem_to_hbm [thread:$0]  %s226, 128, %s4, [#allocation9]
    $region29: #{tpu_custom_call.1} parent=1 // pred_fallthru
      _
    // Predicated region
    $region30: #{tpu_custom_call.1} parent=1 // pred_check
      _
    $region31: #{tpu_custom_call.1} parent=1 // pred_check_branch
      %230 = sbr.rel (0) target = $region33
    $region32: #{tpu_custom_call.1} parent=1 // pred_region
      %231 = dma.done [#allocation4], 128
    $region33: #{tpu_custom_call.1} parent=1 // pred_fallthru
      _
    // Predicated region
    $region34: #{tpu_custom_call.1} parent=1 // pred_check
      _
    $region35: #{tpu_custom_call.1} parent=1 // pred_check_branch
      %233 = sbr.rel (0) target = $region37
    $region36: #{tpu_custom_call.1} parent=1 // pred_region
      %234 = dma.done [#allocation9], 128
    $region37: #{tpu_custom_call.1} parent=1 // pred_fallthru
      _
    %235 = vsyncpa [#allocation3], 1
    %236 = vsyncpa [#allocation6], 1
    %237 = vsyncpa [#allocation4], 1
    %238 = vsyncpa [#allocation9], 1

</llo_original>
